<compile_context>
chip_gen: v5e
topology: v5e:2x2
jax: 0.10.0
libtpu: 0.0.40
codegen_flags: <defaults>
</compile_context>

<pallas_src>
import numpy as np
import jax
import jax.numpy as jnp
from jax import lax
from jax.experimental import pallas as pl
from jax.experimental.pallas import tpu as pltpu


def _dws_kernel(x_ref, xt_ref, xb_ref, wdw_ref, s1_ref, b1_ref,
                wpw_ref, s2_ref, b2_ref, o_ref, xpad_ref):
    """Fused depthwise-separable block for one (batch, row-tile) grid step.

    x_ref   : (1, TH, W, Cin)   main row tile (NHWC)
    xt_ref  : (1, 1, W, Cin)    row above the tile (clamped; zeroed at r == 0)
    xb_ref  : (1, 1, W, Cin)    row below the tile (clamped; zeroed at last r)
    wdw_ref : (9, Cin)          depthwise kernel, taps flattened row-major
    s1_ref  : (1, Cin)    f32   folded BN1 scale    b1_ref: (1, Cin)    bias
    wpw_ref : (Cin, Cout)       pointwise kernel (Cout possibly 128-padded)
    s2_ref  : (1, Cout)   f32   folded BN2 scale    b2_ref: (1, Cout)   bias
    o_ref   : (1, TH, W, Cout)
    xpad_ref: (TH+2, W+2, Cin)  VMEM scratch (halo-padded tile)
    """
    r = pl.program_id(1)
    last = pl.num_programs(1) - 1
    _, TH, W, Cin = x_ref.shape
    Cout = o_ref.shape[3]
    dtype = x_ref.dtype

    # ---- assemble the halo-padded tile in VMEM (no HBM padded copy) --------
    zcol = jnp.zeros((TH + 2, 1, Cin), dtype)
    xpad_ref[:, 0:1, :] = zcol                        # left border column
    xpad_ref[:, W + 1:W + 2, :] = zcol                # right border column
    xpad_ref[1:TH + 1, 1:W + 1, :] = x_ref[0]

    @pl.when(r == 0)
    def _():
        xpad_ref[0:1, 1:W + 1, :] = jnp.zeros((1, W, Cin), dtype)

    @pl.when(r != 0)
    def _():
        xpad_ref[0:1, 1:W + 1, :] = xt_ref[0]

    @pl.when(r == last)
    def _():
        xpad_ref[TH + 1:TH + 2, 1:W + 1, :] = jnp.zeros((1, W, Cin), dtype)

    @pl.when(r != last)
    def _():
        xpad_ref[TH + 1:TH + 2, 1:W + 1, :] = xb_ref[0]

    # ---- depthwise 3x3: 9 shifted taps; weights loaded once (hoisted) ------
    wdw = wdw_ref[...]                                # (9, Cin)
    acc = xpad_ref[0:TH, 0:W, :] * wdw[0]             # first tap seeds the acc
    for k in range(1, 9):
        kh, kw = divmod(k, 3)
        acc = acc + xpad_ref[kh:kh + TH, kw:kw + W, :] * wdw[k]

    # ---- folded BN1 + ReLU6 (f32), back to model dtype for the MXU ---------
    dw = acc.astype(jnp.float32) * s1_ref[0] + b1_ref[0]
    dw = jnp.clip(dw, 0.0, 6.0).astype(wpw_ref.dtype)

    # ---- pointwise 1x1 conv == (TH*W, Cin) @ (Cin, Cout) on the MXU --------
    pw = jnp.dot(dw.reshape(TH * W, Cin), wpw_ref[...],
                 preferred_element_type=jnp.float32)

    # ---- folded BN2 + ReLU6; store ------------------------------------------
    pw = jnp.clip(pw * s2_ref[0] + b2_ref[0], 0.0, 6.0)
    o_ref[0] = pw.reshape(TH, W, Cout).astype(o_ref.dtype)


def _round_up(x, m):
    return (x + m - 1) // m * m


def _pick_row_tile(N, H, W, Cin, Cout_pad, itemsize,
                   budget_bytes=18 * 2 ** 20, min_steps=8):
    """Largest divisor of H whose per-step footprint fits the VMEM budget,
    preferring tiles that leave at least `min_steps` grid steps so the
    auto-pipeline can hide the input/output DMA."""
    def footprint(th):
        io = 2 * ((th + 2) * W * Cin + th * W * Cout_pad) * itemsize  # dbl-buffered
        scratch = (th + 2) * (W + 2) * Cin * itemsize                 # padded tile
        tmp = th * W * Cin * itemsize + 2 * th * W * max(Cin, Cout_pad) * 4
        return io + scratch + tmp

    divisors = [d for d in range(1, H + 1)
                if H % d == 0 and footprint(d) <= budget_bytes]
    if not divisors:
        return 1
    deep = [d for d in divisors if N * (H // d) >= min_steps]
    return max(deep) if deep else max(divisors)


def depthwise_separable_nhwc(x, w_dw, s1, b1, w_pw, s2, b2, *, row_tile=None):
    """Fused depthwise-separable block, channels-last.

    x    : (N, H, W, Cin)
    w_dw : (3, 3, Cin)          depthwise kernel
    s1,b1: (Cin,)               folded BN1 scale / bias (conv bias folded in)
    w_pw : (Cin, Cout)          pointwise kernel
    s2,b2: (Cout,)              folded BN2 scale / bias
    Returns (N, H, W, Cout).
    """
    N, H, W, Cin = x.shape
    Cout = w_pw.shape[1]

    # Lane-dense output channels only when the write amplification is small
    # (<= 25%); otherwise keep the exact Cout (masked stores, less HBM traffic).
    Cout_pad = _round_up(Cout, 128)
    if Cout_pad != Cout and Cout_pad * 4 > Cout * 5:
        Cout_pad = Cout
    if Cout_pad != Cout:
        w_pw = jnp.pad(w_pw, ((0, 0), (0, Cout_pad - Cout)))
        s2 = jnp.pad(s2, (0, Cout_pad - Cout))
        b2 = jnp.pad(b2, (0, Cout_pad - Cout))

    w_dw = w_dw.reshape(9, Cin)                       # taps flattened row-major
    s1 = s1.reshape(1, Cin).astype(jnp.float32)
    b1 = b1.reshape(1, Cin).astype(jnp.float32)
    s2 = s2.reshape(1, Cout_pad).astype(jnp.float32)
    b2 = b2.reshape(1, Cout_pad).astype(jnp.float32)

    itemsize = jnp.dtype(x.dtype).itemsize
    th = row_tile if row_tile is not None else _pick_row_tile(
        N, H, W, Cin, Cout_pad, itemsize)
    if H % th != 0:
        raise ValueError(f"row_tile={th} must divide H={H}")
    R = H // th

    cost = pl.CostEstimate(
        flops=2 * N * H * W * Cin * (9 + Cout_pad),
        transcendentals=0,
        bytes_accessed=(N * H * W * (Cin + Cout_pad)) * itemsize
                       + (w_dw.size + w_pw.size) * itemsize
                       + (s1.size + b1.size + s2.size + b2.size) * 4)

    out = pl.pallas_call(
        _dws_kernel,
        out_shape=jax.ShapeDtypeStruct((N, H, W, Cout_pad), x.dtype),
        grid_spec=pltpu.PrefetchScalarGridSpec(
            num_scalar_prefetch=0,
            grid=(N, R),
            in_specs=[
                # main row tile
                pl.BlockSpec((1, th, W, Cin), lambda n, r: (n, r, 0, 0)),
                # 1-row top halo (clamped at the image top; zeroed in-kernel)
                pl.BlockSpec((1, 1, W, Cin),
                             lambda n, r: (n, jnp.maximum(r * th - 1, 0), 0, 0)),
                # 1-row bottom halo (clamped at image bottom; zeroed in-kernel)
                pl.BlockSpec((1, 1, W, Cin),
                             lambda n, r: (n, jnp.minimum((r + 1) * th, H - 1), 0, 0)),
                pl.BlockSpec((9, Cin), lambda n, r: (0, 0)),
                pl.BlockSpec((1, Cin), lambda n, r: (0, 0)),
                pl.BlockSpec((1, Cin), lambda n, r: (0, 0)),
                pl.BlockSpec((Cin, Cout_pad), lambda n, r: (0, 0)),
                pl.BlockSpec((1, Cout_pad), lambda n, r: (0, 0)),
                pl.BlockSpec((1, Cout_pad), lambda n, r: (0, 0)),
            ],
            out_specs=pl.BlockSpec((1, th, W, Cout_pad),
                                   lambda n, r: (n, r, 0, 0)),
            scratch_shapes=[pltpu.VMEM((th + 2, W + 2, Cin), x.dtype)],
        ),
        compiler_params=pltpu.CompilerParams(
            dimension_semantics=("parallel", "parallel"),
            vmem_limit_bytes=40 * 2 ** 20),   # fits v7x's 64 MiB with headroom
        cost_estimate=cost,
    )(x, x, x, w_dw, s1, b1, w_pw, s2, b2)

    if Cout_pad != Cout:
        out = out[..., :Cout]
    return out


def depthwise_separable_pallas(x_nchw, w_dw, s1, b1, w_pw, s2, b2, *,
                               row_tile=None):
    """Convenience NCHW wrapper (PyTorch convention). For production, call
    depthwise_separable_nhwc directly and keep the layout change outside the
    hot path."""
    x = jnp.transpose(x_nchw, (0, 2, 3, 1))
    out = depthwise_separable_nhwc(x, w_dw, s1, b1, w_pw, s2, b2,
                                   row_tile=row_tile)
    return jnp.transpose(out, (0, 3, 1, 2))


def _reference_forward(x_nchw, params):
    """Pure-JAX reference matching PyTorch eval-mode forward (NCHW)."""
    eps = 1e-5
    (wd, bd, g1, be1, m1, v1, wp, bp, g2, be2, m2, v2) = params

    y = lax.conv_general_dilated(
        x_nchw, wd, window_strides=(1, 1), padding=((1, 1), (1, 1)),
        dimension_numbers=("NCHW", "OIHW", "NCHW"),
        feature_group_count=x_nchw.shape[1])
    y = y + bd[None, :, None, None]
    y = (y - m1[None, :, None, None]) / jnp.sqrt(v1[None, :, None, None] + eps)
    y = y * g1[None, :, None, None] + be1[None, :, None, None]
    y = jnp.clip(y, 0.0, 6.0)

    z = lax.conv_general_dilated(
        y, wp, window_strides=(1, 1), padding=((0, 0), (0, 0)),
        dimension_numbers=("NCHW", "OIHW", "NCHW"))
    z = z + bp[None, :, None, None]
    z = (z - m2[None, :, None, None]) / jnp.sqrt(v2[None, :, None, None] + eps)
    z = z * g2[None, :, None, None] + be2[None, :, None, None]
    z = jnp.clip(z, 0.0, 6.0)
    return z


if __name__ == "__main__":
    N, Cin, Cout, H, W = 2, 4, 8, 16, 16
    eps = 1e-5

    key = jax.random.PRNGKey(0)
    ks = jax.random.split(key, 13)

    # PyTorch-shaped parameters (deterministic, synthetic).
    x = jax.random.normal(ks[0], (N, Cin, H, W), jnp.float32)
    w_dw_t = jax.random.normal(ks[1], (Cin, 1, 3, 3), jnp.float32) * 0.3   # depthwise weight
    b_dw = jax.random.normal(ks[2], (Cin,), jnp.float32) * 0.1
    g1 = 1.0 + 0.1 * jax.random.normal(ks[3], (Cin,), jnp.float32)         # BN1 gamma
    be1 = 0.1 * jax.random.normal(ks[4], (Cin,), jnp.float32)              # BN1 beta
    m1 = 0.1 * jax.random.normal(ks[5], (Cin,), jnp.float32)               # BN1 running_mean
    v1 = jax.random.uniform(ks[6], (Cin,), jnp.float32, 0.5, 1.5)          # BN1 running_var
    w_pw_t = jax.random.normal(ks[7], (Cout, Cin, 1, 1), jnp.float32) * 0.3  # pointwise weight
    b_pw = jax.random.normal(ks[8], (Cout,), jnp.float32) * 0.1
    g2 = 1.0 + 0.1 * jax.random.normal(ks[9], (Cout,), jnp.float32)
    be2 = 0.1 * jax.random.normal(ks[10], (Cout,), jnp.float32)
    m2 = 0.1 * jax.random.normal(ks[11], (Cout,), jnp.float32)
    v2 = jax.random.uniform(ks[12], (Cout,), jnp.float32, 0.5, 1.5)

    # Fold conv bias + eval BatchNorm into per-channel scale/bias.
    s1 = g1 / jnp.sqrt(v1 + eps)
    b1_eff = be1 + (b_dw - m1) * s1
    s2 = g2 / jnp.sqrt(v2 + eps)
    b2_eff = be2 + (b_pw - m2) * s2

    # Re-layout weights for the NHWC kernel.
    w_dw_k = jnp.transpose(w_dw_t[:, 0, :, :], (1, 2, 0))  # (3, 3, Cin)
    w_pw_k = jnp.transpose(w_pw_t[:, :, 0, 0], (1, 0))     # (Cin, Cout)

    ref = _reference_forward(
        x, (w_dw_t, b_dw, g1, be1, m1, v1, w_pw_t, b_pw, g2, be2, m2, v2))

    # Auto row tile (multi-tile path: grid = (N, H // th)).
    out = depthwise_separable_pallas(x, w_dw_k, s1, b1_eff, w_pw_k, s2, b2_eff)
    out = jax.block_until_ready(out)
    np.testing.assert_allclose(np.asarray(out), np.asarray(ref),
                               rtol=1e-4, atol=1e-4)

    # Single-tile path (both halos masked) — exercises boundary masking.
    out_single = depthwise_separable_pallas(x, w_dw_k, s1, b1_eff, w_pw_k,
                                            s2, b2_eff, row_tile=H)
    out_single = jax.block_until_ready(out_single)
    np.testing.assert_allclose(np.asarray(out_single), np.asarray(ref),
                               rtol=1e-4, atol=1e-4)

    print("KERNEL_OK")
</pallas_src>

<mosaic_0001>
module attributes {stable_mosaic.version = 11 : i64} {
  func.func @_dws_kernel(%arg0: i32, %arg1: i32, %arg2: memref<1x4x16x4xf32, #tpu.memory_space<vmem>>, %arg3: memref<1x1x16x4xf32, #tpu.memory_space<vmem>>, %arg4: memref<1x1x16x4xf32, #tpu.memory_space<vmem>>, %arg5: memref<9x4xf32, #tpu.memory_space<vmem>>, %arg6: memref<1x4xf32, #tpu.memory_space<vmem>>, %arg7: memref<1x4xf32, #tpu.memory_space<vmem>>, %arg8: memref<4x8xf32, #tpu.memory_space<vmem>>, %arg9: memref<1x8xf32, #tpu.memory_space<vmem>>, %arg10: memref<1x8xf32, #tpu.memory_space<vmem>>, %arg11: memref<1x4x16x8xf32, #tpu.memory_space<vmem>>, %arg12: memref<6x18x4xf32, #tpu.memory_space<vmem>>) attributes {dimension_semantics = [#tpu.dimension_semantics<parallel>, #tpu.dimension_semantics<parallel>], iteration_bounds = array<i64: 2, 4>, scalar_prefetch = 0 : i64, scratch_operands = 1 : i64, tpu.core_type = #tpu.core_type<tc>, window_params = [{transform_indices = @transform_0, window_bounds = array<i64: 1, 4, 16, 4>}, {transform_indices = @transform_1, window_bounds = array<i64: 1, 1, 16, 4>}, {transform_indices = @transform_2, window_bounds = array<i64: 1, 1, 16, 4>}, {pipeline_mode = #tpu.pipeline_mode<synchronous>, transform_indices = @transform_3, window_bounds = array<i64: 9, 4>}, {pipeline_mode = #tpu.pipeline_mode<synchronous>, transform_indices = @transform_4, window_bounds = array<i64: 1, 4>}, {pipeline_mode = #tpu.pipeline_mode<synchronous>, transform_indices = @transform_5, window_bounds = array<i64: 1, 4>}, {pipeline_mode = #tpu.pipeline_mode<synchronous>, transform_indices = @transform_6, window_bounds = array<i64: 4, 8>}, {pipeline_mode = #tpu.pipeline_mode<synchronous>, transform_indices = @transform_7, window_bounds = array<i64: 1, 8>}, {pipeline_mode = #tpu.pipeline_mode<synchronous>, transform_indices = @transform_8, window_bounds = array<i64: 1, 8>}, {transform_indices = @transform_9, window_bounds = array<i64: 1, 4, 16, 8>}]} {
    %cst = arith.constant 0.000000e+00 : f32
    %0 = vector.broadcast %cst : f32 to vector<6x1x4xf32>
    %c0 = arith.constant 0 : index
    %c0_0 = arith.constant 0 : index
    %c0_1 = arith.constant 0 : index
    %1 = vector.load %arg12[%c0, %c0_0, %c0_1] : memref<6x18x4xf32, #tpu.memory_space<vmem>>, vector<6x1x4xf32>
    tpu.vector_store %arg12[%c0, %c0_0, %c0_1], %0 {strides = array<i32>} : memref<6x18x4xf32, #tpu.memory_space<vmem>>, vector<6x1x4xf32>,
    %c0_2 = arith.constant 0 : index
    %c17 = arith.constant 17 : index
    %c0_3 = arith.constant 0 : index
    %2 = vector.load %arg12[%c0_2, %c17, %c0_3] : memref<6x18x4xf32, #tpu.memory_space<vmem>>, vector<6x1x4xf32>
    tpu.vector_store %arg12[%c0_2, %c17, %c0_3], %0 {strides = array<i32>} : memref<6x18x4xf32, #tpu.memory_space<vmem>>, vector<6x1x4xf32>,
    %c0_4 = arith.constant 0 : index
    %c0_5 = arith.constant 0 : index
    %c0_6 = arith.constant 0 : index
    %c0_7 = arith.constant 0 : index
    %3 = vector.load %arg2[%c0_4, %c0_5, %c0_6, %c0_7] : memref<1x4x16x4xf32, #tpu.memory_space<vmem>>, vector<1x4x16x4xf32>
    %4 = vector.shape_cast %3 : vector<1x4x16x4xf32> to vector<4x16x4xf32>
    %c1 = arith.constant 1 : index
    %c1_8 = arith.constant 1 : index
    %c0_9 = arith.constant 0 : index
    %5 = vector.load %arg12[%c1, %c1_8, %c0_9] : memref<6x18x4xf32, #tpu.memory_space<vmem>>, vector<4x16x4xf32>
    tpu.vector_store %arg12[%c1, %c1_8, %c0_9], %4 {strides = array<i32>} : memref<6x18x4xf32, #tpu.memory_space<vmem>>, vector<4x16x4xf32>,
    %c0_i32 = arith.constant 0 : i32
    %6 = arith.cmpi eq, %arg1, %c0_i32 : i32
    %7 = arith.extui %6 : i1 to i32
    %c0_i32_10 = arith.constant 0 : i32
    %8 = arith.cmpi ne, %7, %c0_i32_10 : i32
    scf.if %8 {
      %cst_63 = arith.constant 0.000000e+00 : f32
      %116 = vector.broadcast %cst_63 : f32 to vector<1x16x4xf32>
      %c0_64 = arith.constant 0 : index
      %c1_65 = arith.constant 1 : index
      %c0_66 = arith.constant 0 : index
      %117 = vector.load %arg12[%c0_64, %c1_65, %c0_66] : memref<6x18x4xf32, #tpu.memory_space<vmem>>, vector<1x16x4xf32>
      tpu.vector_store %arg12[%c0_64, %c1_65, %c0_66], %116 {strides = array<i32>} : memref<6x18x4xf32, #tpu.memory_space<vmem>>, vector<1x16x4xf32>,
    } else {
    }
    %c0_i32_11 = arith.constant 0 : i32
    %9 = arith.cmpi ne, %arg1, %c0_i32_11 : i32
    %10 = arith.extui %9 : i1 to i32
    %c0_i32_12 = arith.constant 0 : i32
    %11 = arith.cmpi ne, %10, %c0_i32_12 : i32
    scf.if %11 {
      %c0_63 = arith.constant 0 : index
      %c0_64 = arith.constant 0 : index
      %c0_65 = arith.constant 0 : index
      %c0_66 = arith.constant 0 : index
      %116 = vector.load %arg3[%c0_63, %c0_64, %c0_65, %c0_66] : memref<1x1x16x4xf32, #tpu.memory_space<vmem>>, vector<1x1x16x4xf32>
      %117 = vector.shape_cast %116 : vector<1x1x16x4xf32> to vector<1x16x4xf32>
      %c0_67 = arith.constant 0 : index
      %c1_68 = arith.constant 1 : index
      %c0_69 = arith.constant 0 : index
      %118 = vector.load %arg12[%c0_67, %c1_68, %c0_69] : memref<6x18x4xf32, #tpu.memory_space<vmem>>, vector<1x16x4xf32>
      tpu.vector_store %arg12[%c0_67, %c1_68, %c0_69], %117 {strides = array<i32>} : memref<6x18x4xf32, #tpu.memory_space<vmem>>, vector<1x16x4xf32>,
    } else {
    }
    %c3_i32 = arith.constant 3 : i32
    %12 = arith.cmpi eq, %arg1, %c3_i32 : i32
    %13 = arith.extui %12 : i1 to i32
    %c0_i32_13 = arith.constant 0 : i32
    %14 = arith.cmpi ne, %13, %c0_i32_13 : i32
    scf.if %14 {
      %cst_63 = arith.constant 0.000000e+00 : f32
      %116 = vector.broadcast %cst_63 : f32 to vector<1x16x4xf32>
      %c5 = arith.constant 5 : index
      %c1_64 = arith.constant 1 : index
      %c0_65 = arith.constant 0 : index
      %117 = vector.load %arg12[%c5, %c1_64, %c0_65] : memref<6x18x4xf32, #tpu.memory_space<vmem>>, vector<1x16x4xf32>
      tpu.vector_store %arg12[%c5, %c1_64, %c0_65], %116 {strides = array<i32>} : memref<6x18x4xf32, #tpu.memory_space<vmem>>, vector<1x16x4xf32>,
    } else {
    }
    %c3_i32_14 = arith.constant 3 : i32
    %15 = arith.cmpi ne, %arg1, %c3_i32_14 : i32
    %16 = arith.extui %15 : i1 to i32
    %c0_i32_15 = arith.constant 0 : i32
    %17 = arith.cmpi ne, %16, %c0_i32_15 : i32
    scf.if %17 {
      %c0_63 = arith.constant 0 : index
      %c0_64 = arith.constant 0 : index
      %c0_65 = arith.constant 0 : index
      %c0_66 = arith.constant 0 : index
      %116 = vector.load %arg4[%c0_63, %c0_64, %c0_65, %c0_66] : memref<1x1x16x4xf32, #tpu.memory_space<vmem>>, vector<1x1x16x4xf32>
      %117 = vector.shape_cast %116 : vector<1x1x16x4xf32> to vector<1x16x4xf32>
      %c5 = arith.constant 5 : index
      %c1_67 = arith.constant 1 : index
      %c0_68 = arith.constant 0 : index
      %118 = vector.load %arg12[%c5, %c1_67, %c0_68] : memref<6x18x4xf32, #tpu.memory_space<vmem>>, vector<1x16x4xf32>
      tpu.vector_store %arg12[%c5, %c1_67, %c0_68], %117 {strides = array<i32>} : memref<6x18x4xf32, #tpu.memory_space<vmem>>, vector<1x16x4xf32>,
    } else {
    }
    %c0_16 = arith.constant 0 : index
    %c0_17 = arith.constant 0 : index
    %18 = vector.load %arg5[%c0_16, %c0_17] : memref<9x4xf32, #tpu.memory_space<vmem>>, vector<9x4xf32>
    %c0_18 = arith.constant 0 : index
    %c0_19 = arith.constant 0 : index
    %c0_20 = arith.constant 0 : index
    %19 = vector.load %arg12[%c0_18, %c0_19, %c0_20] : memref<6x18x4xf32, #tpu.memory_space<vmem>>, vector<4x16x4xf32>
    %20 = vector.extract_strided_slice %18 {offsets = [0, 0], sizes = [1, 4], strides = [1, 1]} : vector<9x4xf32> to vector<1x4xf32>
    %21 = vector.shape_cast %20 : vector<1x4xf32> to vector<4xf32>
    %22 = vector.shape_cast %21 : vector<4xf32> to vector<1x1x4xf32>
    %23 = vector.broadcast %22 : vector<1x1x4xf32> to vector<4x16x4xf32>
    %24 = arith.mulf %19, %23 : vector<4x16x4xf32>
    %c0_21 = arith.constant 0 : index
    %c1_22 = arith.constant 1 : index
    %c0_23 = arith.constant 0 : index
    %25 = vector.load %arg12[%c0_21, %c1_22, %c0_23] : memref<6x18x4xf32, #tpu.memory_space<vmem>>, vector<4x16x4xf32>
    %26 = vector.extract_strided_slice %18 {offsets = [1, 0], sizes = [1, 4], strides = [1, 1]} : vector<9x4xf32> to vector<1x4xf32>
    %27 = vector.shape_cast %26 : vector<1x4xf32> to vector<4xf32>
    %28 = vector.shape_cast %27 : vector<4xf32> to vector<1x1x4xf32>
    %29 = vector.broadcast %28 : vector<1x1x4xf32> to vector<4x16x4xf32>
    %30 = arith.mulf %25, %29 : vector<4x16x4xf32>
    %31 = arith.addf %24, %30 : vector<4x16x4xf32>
    %c0_24 = arith.constant 0 : index
    %c2 = arith.constant 2 : index
    %c0_25 = arith.constant 0 : index
    %32 = vector.load %arg12[%c0_24, %c2, %c0_25] : memref<6x18x4xf32, #tpu.memory_space<vmem>>, vector<4x16x4xf32>
    %33 = vector.extract_strided_slice %18 {offsets = [2, 0], sizes = [1, 4], strides = [1, 1]} : vector<9x4xf32> to vector<1x4xf32>
    %34 = vector.shape_cast %33 : vector<1x4xf32> to vector<4xf32>
    %35 = vector.shape_cast %34 : vector<4xf32> to vector<1x1x4xf32>
    %36 = vector.broadcast %35 : vector<1x1x4xf32> to vector<4x16x4xf32>
    %37 = arith.mulf %32, %36 : vector<4x16x4xf32>
    %38 = arith.addf %31, %37 : vector<4x16x4xf32>
    %c1_26 = arith.constant 1 : index
    %c0_27 = arith.constant 0 : index
    %c0_28 = arith.constant 0 : index
    %39 = vector.load %arg12[%c1_26, %c0_27, %c0_28] : memref<6x18x4xf32, #tpu.memory_space<vmem>>, vector<4x16x4xf32>
    %40 = vector.extract_strided_slice %18 {offsets = [3, 0], sizes = [1, 4], strides = [1, 1]} : vector<9x4xf32> to vector<1x4xf32>
    %41 = vector.shape_cast %40 : vector<1x4xf32> to vector<4xf32>
    %42 = vector.shape_cast %41 : vector<4xf32> to vector<1x1x4xf32>
    %43 = vector.broadcast %42 : vector<1x1x4xf32> to vector<4x16x4xf32>
    %44 = arith.mulf %39, %43 : vector<4x16x4xf32>
    %45 = arith.addf %38, %44 : vector<4x16x4xf32>
    %c1_29 = arith.constant 1 : index
    %c1_30 = arith.constant 1 : index
    %c0_31 = arith.constant 0 : index
    %46 = vector.load %arg12[%c1_29, %c1_30, %c0_31] : memref<6x18x4xf32, #tpu.memory_space<vmem>>, vector<4x16x4xf32>
    %47 = vector.extract_strided_slice %18 {offsets = [4, 0], sizes = [1, 4], strides = [1, 1]} : vector<9x4xf32> to vector<1x4xf32>
    %48 = vector.shape_cast %47 : vector<1x4xf32> to vector<4xf32>
    %49 = vector.shape_cast %48 : vector<4xf32> to vector<1x1x4xf32>
    %50 = vector.broadcast %49 : vector<1x1x4xf32> to vector<4x16x4xf32>
    %51 = arith.mulf %46, %50 : vector<4x16x4xf32>
    %52 = arith.addf %45, %51 : vector<4x16x4xf32>
    %c1_32 = arith.constant 1 : index
    %c2_33 = arith.constant 2 : index
    %c0_34 = arith.constant 0 : index
    %53 = vector.load %arg12[%c1_32, %c2_33, %c0_34] : memref<6x18x4xf32, #tpu.memory_space<vmem>>, vector<4x16x4xf32>
    %54 = vector.extract_strided_slice %18 {offsets = [5, 0], sizes = [1, 4], strides = [1, 1]} : vector<9x4xf32> to vector<1x4xf32>
    %55 = vector.shape_cast %54 : vector<1x4xf32> to vector<4xf32>
    %56 = vector.shape_cast %55 : vector<4xf32> to vector<1x1x4xf32>
    %57 = vector.broadcast %56 : vector<1x1x4xf32> to vector<4x16x4xf32>
    %58 = arith.mulf %53, %57 : vector<4x16x4xf32>
    %59 = arith.addf %52, %58 : vector<4x16x4xf32>
    %c2_35 = arith.constant 2 : index
    %c0_36 = arith.constant 0 : index
    %c0_37 = arith.constant 0 : index
    %60 = vector.load %arg12[%c2_35, %c0_36, %c0_37] : memref<6x18x4xf32, #tpu.memory_space<vmem>>, vector<4x16x4xf32>
    %61 = vector.extract_strided_slice %18 {offsets = [6, 0], sizes = [1, 4], strides = [1, 1]} : vector<9x4xf32> to vector<1x4xf32>
    %62 = vector.shape_cast %61 : vector<1x4xf32> to vector<4xf32>
    %63 = vector.shape_cast %62 : vector<4xf32> to vector<1x1x4xf32>
    %64 = vector.broadcast %63 : vector<1x1x4xf32> to vector<4x16x4xf32>
    %65 = arith.mulf %60, %64 : vector<4x16x4xf32>
    %66 = arith.addf %59, %65 : vector<4x16x4xf32>
    %c2_38 = arith.constant 2 : index
    %c1_39 = arith.constant 1 : index
    %c0_40 = arith.constant 0 : index
    %67 = vector.load %arg12[%c2_38, %c1_39, %c0_40] : memref<6x18x4xf32, #tpu.memory_space<vmem>>, vector<4x16x4xf32>
    %68 = vector.extract_strided_slice %18 {offsets = [7, 0], sizes = [1, 4], strides = [1, 1]} : vector<9x4xf32> to vector<1x4xf32>
    %69 = vector.shape_cast %68 : vector<1x4xf32> to vector<4xf32>
    %70 = vector.shape_cast %69 : vector<4xf32> to vector<1x1x4xf32>
    %71 = vector.broadcast %70 : vector<1x1x4xf32> to vector<4x16x4xf32>
    %72 = arith.mulf %67, %71 : vector<4x16x4xf32>
    %73 = arith.addf %66, %72 : vector<4x16x4xf32>
    %c2_41 = arith.constant 2 : index
    %c2_42 = arith.constant 2 : index
    %c0_43 = arith.constant 0 : index
    %74 = vector.load %arg12[%c2_41, %c2_42, %c0_43] : memref<6x18x4xf32, #tpu.memory_space<vmem>>, vector<4x16x4xf32>
    %75 = vector.extract_strided_slice %18 {offsets = [8, 0], sizes = [1, 4], strides = [1, 1]} : vector<9x4xf32> to vector<1x4xf32>
    %76 = vector.shape_cast %75 : vector<1x4xf32> to vector<4xf32>
    %77 = vector.shape_cast %76 : vector<4xf32> to vector<1x1x4xf32>
    %78 = vector.broadcast %77 : vector<1x1x4xf32> to vector<4x16x4xf32>
    %79 = arith.mulf %74, %78 : vector<4x16x4xf32>
    %80 = arith.addf %73, %79 : vector<4x16x4xf32>
    %c0_44 = arith.constant 0 : index
    %c0_45 = arith.constant 0 : index
    %81 = vector.load %arg6[%c0_44, %c0_45] : memref<1x4xf32, #tpu.memory_space<vmem>>, vector<1x4xf32>
    %82 = vector.shape_cast %81 : vector<1x4xf32> to vector<4xf32>
    %83 = vector.shape_cast %82 : vector<4xf32> to vector<1x1x4xf32>
    %84 = vector.broadcast %83 : vector<1x1x4xf32> to vector<4x16x4xf32>
    %85 = arith.mulf %80, %84 : vector<4x16x4xf32>
    %c0_46 = arith.constant 0 : index
    %c0_47 = arith.constant 0 : index
    %86 = vector.load %arg7[%c0_46, %c0_47] : memref<1x4xf32, #tpu.memory_space<vmem>>, vector<1x4xf32>
    %87 = vector.shape_cast %86 : vector<1x4xf32> to vector<4xf32>
    %88 = vector.shape_cast %87 : vector<4xf32> to vector<1x1x4xf32>
    %89 = vector.broadcast %88 : vector<1x1x4xf32> to vector<4x16x4xf32>
    %90 = arith.addf %85, %89 : vector<4x16x4xf32>
    %cst_48 = arith.constant 0.000000e+00 : f32
    %cst_49 = arith.constant 6.000000e+00 : f32
    %91 = vector.broadcast %cst_48 : f32 to vector<4x16x4xf32>
    %92 = arith.maximumf %91, %90 : vector<4x16x4xf32>
    %93 = vector.broadcast %cst_49 : f32 to vector<4x16x4xf32>
    %94 = arith.minimumf %93, %92 : vector<4x16x4xf32>
    %95 = vector.shape_cast %94 : vector<4x16x4xf32> to vector<64x4xf32>
    %c0_50 = arith.constant 0 : index
    %c0_51 = arith.constant 0 : index
    %96 = vector.load %arg8[%c0_50, %c0_51] : memref<4x8xf32, #tpu.memory_space<vmem>>, vector<4x8xf32>
    %cst_52 = arith.constant dense<0.000000e+00> : vector<64x8xf32>
    %97 = tpu.matmul %95, %96, %cst_52 {dimension_numbers = #tpu.dot_dimension_numbers<[1], [0], [0], [1], [0, 0, 1, 1], [], []>} : vector<64x4xf32>, vector<4x8xf32>, vector<64x8xf32> -> vector<64x8xf32>
    %c0_53 = arith.constant 0 : index
    %c0_54 = arith.constant 0 : index
    %98 = vector.load %arg9[%c0_53, %c0_54] : memref<1x8xf32, #tpu.memory_space<vmem>>, vector<1x8xf32>
    %99 = vector.shape_cast %98 : vector<1x8xf32> to vector<8xf32>
    %100 = vector.shape_cast %99 : vector<8xf32> to vector<1x8xf32>
    %101 = vector.broadcast %100 : vector<1x8xf32> to vector<64x8xf32>
    %102 = arith.mulf %97, %101 : vector<64x8xf32>
    %c0_55 = arith.constant 0 : index
    %c0_56 = arith.constant 0 : index
    %103 = vector.load %arg10[%c0_55, %c0_56] : memref<1x8xf32, #tpu.memory_space<vmem>>, vector<1x8xf32>
    %104 = vector.shape_cast %103 : vector<1x8xf32> to vector<8xf32>
    %105 = vector.shape_cast %104 : vector<8xf32> to vector<1x8xf32>
    %106 = vector.broadcast %105 : vector<1x8xf32> to vector<64x8xf32>
    %107 = arith.addf %102, %106 : vector<64x8xf32>
    %cst_57 = arith.constant 0.000000e+00 : f32
    %cst_58 = arith.constant 6.000000e+00 : f32
    %108 = vector.broadcast %cst_57 : f32 to vector<64x8xf32>
    %109 = arith.maximumf %108, %107 : vector<64x8xf32>
    %110 = vector.broadcast %cst_58 : f32 to vector<64x8xf32>
    %111 = arith.minimumf %110, %109 : vector<64x8xf32>
    %112 = vector.shape_cast %111 : vector<64x8xf32> to vector<4x16x8xf32>
    %c0_59 = arith.constant 0 : index
    %c0_60 = arith.constant 0 : index
    %c0_61 = arith.constant 0 : index
    %c0_62 = arith.constant 0 : index
    %113 = vector.load %arg11[%c0_59, %c0_60, %c0_61, %c0_62] : memref<1x4x16x8xf32, #tpu.memory_space<vmem>>, vector<1x4x16x8xf32>
    %114 = vector.shape_cast %113 : vector<1x4x16x8xf32> to vector<4x16x8xf32>
    %115 = vector.shape_cast %112 : vector<4x16x8xf32> to vector<1x4x16x8xf32>
    tpu.vector_store %arg11[%c0_59, %c0_60, %c0_61, %c0_62], %115 {strides = array<i32>} : memref<1x4x16x8xf32, #tpu.memory_space<vmem>>, vector<1x4x16x8xf32>,
    return
  }
  func.func @transform_0(%arg0: i32, %arg1: i32) -> (i32, i32, i32, i32) {
    %c0_i32 = arith.constant 0 : i32
    %c0_i32_0 = arith.constant 0 : i32
    %c0_i32_1 = arith.constant 0 : i32
    return %arg0, %arg1, %c0_i32, %c0_i32_0 : i32, i32, i32, i32
  }
  func.func @transform_1(%arg0: i32, %arg1: i32) -> (i32, i32, i32, i32) {
    %c4_i32 = arith.constant 4 : i32
    %0 = arith.muli %arg1, %c4_i32 : i32
    %c1_i32 = arith.constant 1 : i32
    %1 = arith.subi %0, %c1_i32 : i32
    %c0_i32 = arith.constant 0 : i32
    %2 = arith.maxsi %1, %c0_i32 : i32
    %c0_i32_0 = arith.constant 0 : i32
    %c0_i32_1 = arith.constant 0 : i32
    %c0_i32_2 = arith.constant 0 : i32
    return %arg0, %2, %c0_i32_0, %c0_i32_1 : i32, i32, i32, i32
  }
  func.func @transform_2(%arg0: i32, %arg1: i32) -> (i32, i32, i32, i32) {
    %c1_i32 = arith.constant 1 : i32
    %0 = arith.addi %arg1, %c1_i32 : i32
    %c4_i32 = arith.constant 4 : i32
    %1 = arith.muli %0, %c4_i32 : i32
    %c15_i32 = arith.constant 15 : i32
    %2 = arith.minsi %1, %c15_i32 : i32
    %c0_i32 = arith.constant 0 : i32
    %c0_i32_0 = arith.constant 0 : i32
    %c0_i32_1 = arith.constant 0 : i32
    return %arg0, %2, %c0_i32, %c0_i32_0 : i32, i32, i32, i32
  }
  func.func @transform_3(%arg0: i32, %arg1: i32) -> (i32, i32) {
    %c0_i32 = arith.constant 0 : i32
    %c0_i32_0 = arith.constant 0 : i32
    %c0_i32_1 = arith.constant 0 : i32
    return %c0_i32, %c0_i32_0 : i32, i32
  }
  func.func @transform_4(%arg0: i32, %arg1: i32) -> (i32, i32) {
    %c0_i32 = arith.constant 0 : i32
    %c0_i32_0 = arith.constant 0 : i32
    %c0_i32_1 = arith.constant 0 : i32
    return %c0_i32, %c0_i32_0 : i32, i32
  }
  func.func @transform_5(%arg0: i32, %arg1: i32) -> (i32, i32) {
    %c0_i32 = arith.constant 0 : i32
    %c0_i32_0 = arith.constant 0 : i32
    %c0_i32_1 = arith.constant 0 : i32
    return %c0_i32, %c0_i32_0 : i32, i32
  }
  func.func @transform_6(%arg0: i32, %arg1: i32) -> (i32, i32) {
    %c0_i32 = arith.constant 0 : i32
    %c0_i32_0 = arith.constant 0 : i32
    %c0_i32_1 = arith.constant 0 : i32
    return %c0_i32, %c0_i32_0 : i32, i32
  }
  func.func @transform_7(%arg0: i32, %arg1: i32) -> (i32, i32) {
    %c0_i32 = arith.constant 0 : i32
    %c0_i32_0 = arith.constant 0 : i32
    %c0_i32_1 = arith.constant 0 : i32
    return %c0_i32, %c0_i32_0 : i32, i32
  }
  func.func @transform_8(%arg0: i32, %arg1: i32) -> (i32, i32) {
    %c0_i32 = arith.constant 0 : i32
    %c0_i32_0 = arith.constant 0 : i32
    %c0_i32_1 = arith.constant 0 : i32
    return %c0_i32, %c0_i32_0 : i32, i32
  }
  func.func @transform_9(%arg0: i32, %arg1: i32) -> (i32, i32, i32, i32) {
    %c0_i32 = arith.constant 0 : i32
    %c0_i32_0 = arith.constant 0 : i32
    %c0_i32_1 = arith.constant 0 : i32
    return %arg0, %arg1, %c0_i32, %c0_i32_0 : i32, i32, i32, i32
  }
}

</mosaic_0001>

<llo_original>
// kernel: tpu_custom_call.1
$region0: #{tpu_custom_call.1}
  #allocation0 [shape = 'u32[]', space=smem, size = 0x4, offset = 0x4, fixed_abs, tag = 'smem constant byte address 0x4 - core index']
  #allocation1 [shape = 'u32[72,128]{1,0:T(1,128)}', space=vmem, size = 0x9000, scoped, tag = 'internal scratch']
  #allocation2 [shape = 'f32[6,18,4]{2,1,0:T(8,128)}', space=vmem, size = 0x12000, scoped, tag = 'scratch operand']
  %s0 = inlined_call_operand.vmem [shape: f32[2,16,16,4], index: 0, kind: input, shape index: {}]
  %s1 = inlined_call_operand.vmem [shape: f32[2,16,16,4], index: 1, kind: input, shape index: {}]
  %s2 = inlined_call_operand.vmem [shape: f32[2,16,16,4], index: 2, kind: input, shape index: {}]
  %s3 = inlined_call_operand.vmem [shape: f32[9,4], index: 3, kind: input, shape index: {}]
  %s4 = inlined_call_operand.vmem [shape: f32[1,4], index: 4, kind: input, shape index: {}]
  %s5 = inlined_call_operand.vmem [shape: f32[1,4], index: 5, kind: input, shape index: {}]
  %s6 = inlined_call_operand.vmem [shape: f32[4,8], index: 6, kind: input, shape index: {}]
  %s7 = inlined_call_operand.vmem [shape: f32[1,8], index: 7, kind: input, shape index: {}]
  %s8 = inlined_call_operand.vmem [shape: f32[1,8], index: 8, kind: input, shape index: {}]
  %s9 = inlined_call_operand.vmem [shape: f32[2,16,16,8], index: 9, kind: output, shape index: {}]
  %s10 = sld [smem:[#allocation0]]
  $region85: #{tpu_custom_call.1} parent=0
    _
  %s12 = ssub.s32 1, %s10
  %s13 = scalar_select 0, %s12, %s10
  loop: start=0, step=1, limit=10
  $region2: #{tpu_custom_call.1} parent=0 // loop_pre_header
    _
  $region3: #{tpu_custom_call.1} parent=0 // loop_header
    %s15 = sphi 0, %s19
    %p16 = scmp.ge.s32.totalorder %s15, 10
    %s22 = sphi 0, %s34
    %s23 = sphi 0, %s30
    %s24 = sphi 0, %s22
    %s25 = sphi 0, %s23
    %s26 = sphi 0, %s24
    %s27 = sphi 0, %s25
    %s39 = sphi 0, %s41
    %s42 = sphi 0, %s39
    %s43 = sphi 0, %s42
    %s59 = sphi 0, %s43
    %s75 = sphi 0, %s77
    %s78 = sphi 0, %s75
    %s79 = sphi 0, %s78
    %s95 = sphi 0, %s79
    %s111 = sphi 0, %s113
    %s114 = sphi 0, %s111
    %s115 = sphi 0, %s114
    %s131 = sphi 0, %s115
    %s135 = sphi 0, %s135
    %s137 = sphi 0, %s135
    %s138 = sphi 0, %s137
    %s152 = sphi 0, %s138
    %s156 = sphi 0, %s156
    %s158 = sphi 0, %s156
    %s159 = sphi 0, %s158
    %s173 = sphi 0, %s159
    %s177 = sphi 0, %s177
    %s179 = sphi 0, %s177
    %s180 = sphi 0, %s179
    %s194 = sphi 0, %s180
    %s198 = sphi 0, %s198
    %s200 = sphi 0, %s198
    %s201 = sphi 0, %s200
    %s215 = sphi 0, %s201
    %s219 = sphi 0, %s219
    %s221 = sphi 0, %s219
    %s222 = sphi 0, %s221
    %s236 = sphi 0, %s222
    %s240 = sphi 0, %s240
    %s242 = sphi 0, %s240
    %s243 = sphi 0, %s242
    %s257 = sphi 0, %s243
    %s265 = sphi 0, %s267
    %s268 = sphi 0, %s265
    %s269 = sphi 0, %s268
    %s285 = sphi 0, %s269
  $region4: #{tpu_custom_call.1} parent=0 // loop_header_branch
    %18 = sbr.rel (%p16) target = $region8
  $region5: #{tpu_custom_call.1} parent=0 // loop_body
    %s20 = ssub.s32 %s15, 1
    %s21 = ssub.s32 %s15, 2
    %s28 = sadd.s32 1, %s23
    %p29 = scmp.ge.s32.totalorder %s28, 4
    %s30 = scalar_select %p29, 0, %s28
    %s31 = sadd.s32 1, %s22
    %s32 = scalar_select %p29, %s31, %s22
    %p33 = scmp.ge.s32.totalorder %s32, 2
    %s34 = scalar_select %p33, 0, %s32
    %s35 = ssub.s32 %s22, %s34
    %s36 = ssub.s32 %s23, %s30
    %s37 = sor.u32 %s35, %s36
    %p38 = scmp.eq.s32.totalorder %s37, 0
    %s40 = sadd.s32 %s39, 1
    %s41 = scalar_select %p38, %s39, %s40
    %p44 = pneg %p38
    %p45 = scmp.eq.s32.totalorder %s15, 7
    %p46 = por %p44, %p45
    %p47 = scmp.ne.s32.totalorder %s39, %s42
    %p48 = scmp.eq.s32.totalorder %s15, 0
    %p49 = por %p47, %p48
    %p50 = scmp.ne.s32.totalorder %s39, %s42
    %p51 = scmp.eq.s32.totalorder %s20, 7
    %p52 = por %p50, %p51
    %p53 = scmp.ne.s32.totalorder %s42, %s43
    %p54 = scmp.eq.s32.totalorder %s20, 0
    %p55 = por %p53, %p54
    %p56 = scmp.ne.s32.totalorder %s42, %s43
    %p57 = scmp.eq.s32.totalorder %s21, 7
    %p58 = por %p56, %p57
    %p60 = scmp.ne.s32.totalorder %s43, %s59
    %p61 = scmp.eq.s32.totalorder %s21, 0
    %p62 = por %p60, %p61
    %s63 = smul.u32 %s23, 4
    %s64 = ssub.s32 %s63, 1
    %p65 = scmp.gt.s32.totalorder %s64, 0
    %s66 = scalar_select %p65, %s64, 0
    %s67 = smul.u32 %s30, 4
    %s68 = ssub.s32 %s67, 1
    %p69 = scmp.gt.s32.totalorder %s68, 0
    %s70 = scalar_select %p69, %s68, 0
    %s71 = ssub.s32 %s22, %s34
    %s72 = ssub.s32 %s66, %s70
    %s73 = sor.u32 %s71, %s72
    %p74 = scmp.eq.s32.totalorder %s73, 0
    %s76 = sadd.s32 %s75, 1
    %s77 = scalar_select %p74, %s75, %s76
    %p80 = pneg %p74
    %p81 = scmp.eq.s32.totalorder %s15, 7
    %p82 = por %p80, %p81
    %p83 = scmp.ne.s32.totalorder %s75, %s78
    %p84 = scmp.eq.s32.totalorder %s15, 0
    %p85 = por %p83, %p84
    %p86 = scmp.ne.s32.totalorder %s75, %s78
    %p87 = scmp.eq.s32.totalorder %s20, 7
    %p88 = por %p86, %p87
    %p89 = scmp.ne.s32.totalorder %s78, %s79
    %p90 = scmp.eq.s32.totalorder %s20, 0
    %p91 = por %p89, %p90
    %p92 = scmp.ne.s32.totalorder %s78, %s79
    %p93 = scmp.eq.s32.totalorder %s21, 7
    %p94 = por %p92, %p93
    %p96 = scmp.ne.s32.totalorder %s79, %s95
    %p97 = scmp.eq.s32.totalorder %s21, 0
    %p98 = por %p96, %p97
    %s99 = sadd.s32 %s23, 1
    %s100 = smul.u32 %s99, 4
    %p101 = scmp.lt.s32.totalorder %s100, 15
    %s102 = scalar_select %p101, %s100, 15
    %s103 = sadd.s32 %s30, 1
    %s104 = smul.u32 %s103, 4
    %p105 = scmp.lt.s32.totalorder %s104, 15
    %s106 = scalar_select %p105, %s104, 15
    %s107 = ssub.s32 %s22, %s34
    %s108 = ssub.s32 %s102, %s106
    %s109 = sor.u32 %s107, %s108
    %p110 = scmp.eq.s32.totalorder %s109, 0
    %s112 = sadd.s32 %s111, 1
    %s113 = scalar_select %p110, %s111, %s112
    %p116 = pneg %p110
    %p117 = scmp.eq.s32.totalorder %s15, 7
    %p118 = por %p116, %p117
    %p119 = scmp.ne.s32.totalorder %s111, %s114
    %p120 = scmp.eq.s32.totalorder %s15, 0
    %p121 = por %p119, %p120
    %p122 = scmp.ne.s32.totalorder %s111, %s114
    %p123 = scmp.eq.s32.totalorder %s20, 7
    %p124 = por %p122, %p123
    %p125 = scmp.ne.s32.totalorder %s114, %s115
    %p126 = scmp.eq.s32.totalorder %s20, 0
    %p127 = por %p125, %p126
    %p128 = scmp.ne.s32.totalorder %s114, %s115
    %p129 = scmp.eq.s32.totalorder %s21, 7
    %p130 = por %p128, %p129
    %p132 = scmp.ne.s32.totalorder %s115, %s131
    %p133 = scmp.eq.s32.totalorder %s21, 0
    %p134 = por %p132, %p133
    %s136 = sadd.s32 %s135, 1
    %p139 = scmp.eq.s32.totalorder %s15, 7
    %p140 = scmp.ne.s32.totalorder %s135, %s137
    %p141 = scmp.eq.s32.totalorder %s15, 0
    %p142 = por %p140, %p141
    %p143 = scmp.ne.s32.totalorder %s135, %s137
    %p144 = scmp.eq.s32.totalorder %s20, 7
    %p145 = por %p143, %p144
    %p146 = scmp.ne.s32.totalorder %s137, %s138
    %p147 = scmp.eq.s32.totalorder %s20, 0
    %p148 = por %p146, %p147
    %p149 = scmp.ne.s32.totalorder %s137, %s138
    %p150 = scmp.eq.s32.totalorder %s21, 7
    %p151 = por %p149, %p150
    %p153 = scmp.ne.s32.totalorder %s138, %s152
    %p154 = scmp.eq.s32.totalorder %s21, 0
    %p155 = por %p153, %p154
    %s157 = sadd.s32 %s156, 1
    %p160 = scmp.eq.s32.totalorder %s15, 7
    %p161 = scmp.ne.s32.totalorder %s156, %s158
    %p162 = scmp.eq.s32.totalorder %s15, 0
    %p163 = por %p161, %p162
    %p164 = scmp.ne.s32.totalorder %s156, %s158
    %p165 = scmp.eq.s32.totalorder %s20, 7
    %p166 = por %p164, %p165
    %p167 = scmp.ne.s32.totalorder %s158, %s159
    %p168 = scmp.eq.s32.totalorder %s20, 0
    %p169 = por %p167, %p168
    %p170 = scmp.ne.s32.totalorder %s158, %s159
    %p171 = scmp.eq.s32.totalorder %s21, 7
    %p172 = por %p170, %p171
    %p174 = scmp.ne.s32.totalorder %s159, %s173
    %p175 = scmp.eq.s32.totalorder %s21, 0
    %p176 = por %p174, %p175
    %s178 = sadd.s32 %s177, 1
    %p181 = scmp.eq.s32.totalorder %s15, 7
    %p182 = scmp.ne.s32.totalorder %s177, %s179
    %p183 = scmp.eq.s32.totalorder %s15, 0
    %p184 = por %p182, %p183
    %p185 = scmp.ne.s32.totalorder %s177, %s179
    %p186 = scmp.eq.s32.totalorder %s20, 7
    %p187 = por %p185, %p186
    %p188 = scmp.ne.s32.totalorder %s179, %s180
    %p189 = scmp.eq.s32.totalorder %s20, 0
    %p190 = por %p188, %p189
    %p191 = scmp.ne.s32.totalorder %s179, %s180
    %p192 = scmp.eq.s32.totalorder %s21, 7
    %p193 = por %p191, %p192
    %p195 = scmp.ne.s32.totalorder %s180, %s194
    %p196 = scmp.eq.s32.totalorder %s21, 0
    %p197 = por %p195, %p196
    %s199 = sadd.s32 %s198, 1
    %p202 = scmp.eq.s32.totalorder %s15, 7
    %p203 = scmp.ne.s32.totalorder %s198, %s200
    %p204 = scmp.eq.s32.totalorder %s15, 0
    %p205 = por %p203, %p204
    %p206 = scmp.ne.s32.totalorder %s198, %s200
    %p207 = scmp.eq.s32.totalorder %s20, 7
    %p208 = por %p206, %p207
    %p209 = scmp.ne.s32.totalorder %s200, %s201
    %p210 = scmp.eq.s32.totalorder %s20, 0
    %p211 = por %p209, %p210
    %p212 = scmp.ne.s32.totalorder %s200, %s201
    %p213 = scmp.eq.s32.totalorder %s21, 7
    %p214 = por %p212, %p213
    %p216 = scmp.ne.s32.totalorder %s201, %s215
    %p217 = scmp.eq.s32.totalorder %s21, 0
    %p218 = por %p216, %p217
    %s220 = sadd.s32 %s219, 1
    %p223 = scmp.eq.s32.totalorder %s15, 7
    %p224 = scmp.ne.s32.totalorder %s219, %s221
    %p225 = scmp.eq.s32.totalorder %s15, 0
    %p226 = por %p224, %p225
    %p227 = scmp.ne.s32.totalorder %s219, %s221
    %p228 = scmp.eq.s32.totalorder %s20, 7
    %p229 = por %p227, %p228
    %p230 = scmp.ne.s32.totalorder %s221, %s222
    %p231 = scmp.eq.s32.totalorder %s20, 0
    %p232 = por %p230, %p231
    %p233 = scmp.ne.s32.totalorder %s221, %s222
    %p234 = scmp.eq.s32.totalorder %s21, 7
    %p235 = por %p233, %p234
    %p237 = scmp.ne.s32.totalorder %s222, %s236
    %p238 = scmp.eq.s32.totalorder %s21, 0
    %p239 = por %p237, %p238
    %s241 = sadd.s32 %s240, 1
    %p244 = scmp.eq.s32.totalorder %s15, 7
    %p245 = scmp.ne.s32.totalorder %s240, %s242
    %p246 = scmp.eq.s32.totalorder %s15, 0
    %p247 = por %p245, %p246
    %p248 = scmp.ne.s32.totalorder %s240, %s242
    %p249 = scmp.eq.s32.totalorder %s20, 7
    %p250 = por %p248, %p249
    %p251 = scmp.ne.s32.totalorder %s242, %s243
    %p252 = scmp.eq.s32.totalorder %s20, 0
    %p253 = por %p251, %p252
    %p254 = scmp.ne.s32.totalorder %s242, %s243
    %p255 = scmp.eq.s32.totalorder %s21, 7
    %p256 = por %p254, %p255
    %p258 = scmp.ne.s32.totalorder %s243, %s257
    %p259 = scmp.eq.s32.totalorder %s21, 0
    %p260 = por %p258, %p259
    %s261 = ssub.s32 %s22, %s34
    %s262 = ssub.s32 %s23, %s30
    %s263 = sor.u32 %s261, %s262
    %p264 = scmp.eq.s32.totalorder %s263, 0
    %s266 = sadd.s32 %s265, 1
    %s267 = scalar_select %p264, %s265, %s266
    %p270 = pneg %p264
    %p271 = scmp.eq.s32.totalorder %s15, 7
    %p272 = por %p270, %p271
    %p273 = scmp.ne.s32.totalorder %s265, %s268
    %p274 = scmp.eq.s32.totalorder %s15, 0
    %p275 = por %p273, %p274
    %p276 = scmp.ne.s32.totalorder %s265, %s268
    %p277 = scmp.eq.s32.totalorder %s20, 7
    %p278 = por %p276, %p277
    %p279 = scmp.ne.s32.totalorder %s268, %s269
    %p280 = scmp.eq.s32.totalorder %s20, 0
    %p281 = por %p279, %p280
    %p282 = scmp.ne.s32.totalorder %s268, %s269
    %p283 = scmp.eq.s32.totalorder %s21, 7
    %p284 = por %p282, %p283
    %p286 = scmp.ne.s32.totalorder %s269, %s285
    %p287 = scmp.eq.s32.totalorder %s21, 0
    %p288 = por %p286, %p287
    %p289 = scmp.le.s32.totalorder 1, %s15
    %p290 = scmp.lt.s32.totalorder %s15, 9
    %p291 = pnand %p289, %p290
    %p292 = pneg %p291
    // Predicated region
    $region9: #{tpu_custom_call.1} parent=5 // pred_check
      _
    $region10: #{tpu_custom_call.1} parent=5 // pred_check_branch
      %294 = sbr.rel (%p291) target = $region12
    $region11: #{tpu_custom_call.1} parent=5 // pred_region
      %s295 = ssub.s32 %s15, 1
      // Predicated region
      $region13: #{tpu_custom_call.1} parent=11 // pred_check
        %p296 = pneg %p148
      $region14: #{tpu_custom_call.1} parent=11 // pred_check_branch
        %298 = sbr.rel (%p296) target = $region16
      $region15: #{tpu_custom_call.1} parent=11 // pred_region
        _
      $region16: #{tpu_custom_call.1} parent=11 // pred_fallthru
        _
      // Predicated region
      $region17: #{tpu_custom_call.1} parent=11 // pred_check
        %p299 = pneg %p169
      $region18: #{tpu_custom_call.1} parent=11 // pred_check_branch
        %301 = sbr.rel (%p299) target = $region20
      $region19: #{tpu_custom_call.1} parent=11 // pred_region
        _
      $region20: #{tpu_custom_call.1} parent=11 // pred_fallthru
        _
      // Predicated region
      $region21: #{tpu_custom_call.1} parent=11 // pred_check
        %p302 = pneg %p190
      $region22: #{tpu_custom_call.1} parent=11 // pred_check_branch
        %304 = sbr.rel (%p302) target = $region24
      $region23: #{tpu_custom_call.1} parent=11 // pred_region
        _
      $region24: #{tpu_custom_call.1} parent=11 // pred_fallthru
        _
      // Predicated region
      $region25: #{tpu_custom_call.1} parent=11 // pred_check
        %p305 = pneg %p211
      $region26: #{tpu_custom_call.1} parent=11 // pred_check_branch
        %307 = sbr.rel (%p305) target = $region28
      $region27: #{tpu_custom_call.1} parent=11 // pred_region
        _
      $region28: #{tpu_custom_call.1} parent=11 // pred_fallthru
        _
      // Predicated region
      $region29: #{tpu_custom_call.1} parent=11 // pred_check
        %p308 = pneg %p232
      $region30: #{tpu_custom_call.1} parent=11 // pred_check_branch
        %310 = sbr.rel (%p308) target = $region32
      $region31: #{tpu_custom_call.1} parent=11 // pred_region
        _
      $region32: #{tpu_custom_call.1} parent=11 // pred_fallthru
        _
      // Predicated region
      $region33: #{tpu_custom_call.1} parent=11 // pred_check
        %p311 = pneg %p253
      $region34: #{tpu_custom_call.1} parent=11 // pred_check_branch
        %313 = sbr.rel (%p311) target = $region36
      $region35: #{tpu_custom_call.1} parent=11 // pred_region
        _
      $region36: #{tpu_custom_call.1} parent=11 // pred_fallthru
        _
    $region12: #{tpu_custom_call.1} parent=5 // pred_fallthru
      _
    %p314 = scmp.lt.s32.totalorder %s15, 8
    // Predicated region
    $region37: #{tpu_custom_call.1} parent=5 // pred_check
      %p315 = pneg %p314
    $region38: #{tpu_custom_call.1} parent=5 // pred_check_branch
      %317 = sbr.rel (%p315) target = $region40
    $region39: #{tpu_custom_call.1} parent=5 // pred_region
      // Predicated region
      $region41: #{tpu_custom_call.1} parent=39 // pred_check
        %p318 = pneg %p49
      $region42: #{tpu_custom_call.1} parent=39 // pred_check_branch
        %320 = sbr.rel (%p318) target = $region44
      $region43: #{tpu_custom_call.1} parent=39 // pred_region
        %s321 = smul.u32 4, %s23
        %p322 = scmp.lt.s32.totalorder %s22, 1
        %s323 = scalar_select %p322, %s22, 1
        %p324 = scmp.lt.s32.totalorder %s321, 15
        %s325 = scalar_select %p324, %s321, 15
        %s326 = smul.addr %s325, 2
        %s327 = smul.addr %s323, 32
        %s328 = sadd.s32 %s326, %s327
        %s329 = smul.addr %s328, 8
        %s330 = scalar_lea.vmem %s0, %s329
        %s331 = smul.u32 4, %s23
      $region44: #{tpu_custom_call.1} parent=39 // pred_fallthru
        _
      // Predicated region
      $region45: #{tpu_custom_call.1} parent=39 // pred_check
        %p332 = pneg %p85
      $region46: #{tpu_custom_call.1} parent=39 // pred_check_branch
        %334 = sbr.rel (%p332) target = $region48
      $region47: #{tpu_custom_call.1} parent=39 // pred_region
        %s335 = smul.u32 %s23, 4
        %s336 = ssub.s32 %s335, 1
        %p337 = scmp.gt.s32.totalorder %s336, 0
        %s338 = scalar_select %p337, %s336, 0
        %p339 = scmp.lt.s32.totalorder %s22, 1
        %s340 = scalar_select %p339, %s22, 1
        %p341 = scmp.lt.s32.totalorder %s338, 15
        %s342 = scalar_select %p341, %s338, 15
        %s343 = smul.addr %s342, 2
        %s344 = smul.addr %s340, 32
        %s345 = sadd.s32 %s343, %s344
        %s346 = smul.addr %s345, 8
        %s347 = scalar_lea.vmem %s1, %s346
        %s348 = smul.u32 %s23, 4
        %s349 = ssub.s32 %s348, 1
        %p350 = scmp.gt.s32.totalorder %s349, 0
        %s351 = scalar_select %p350, %s349, 0
      $region48: #{tpu_custom_call.1} parent=39 // pred_fallthru
        _
      // Predicated region
      $region49: #{tpu_custom_call.1} parent=39 // pred_check
        %p352 = pneg %p121
      $region50: #{tpu_custom_call.1} parent=39 // pred_check_branch
        %354 = sbr.rel (%p352) target = $region52
      $region51: #{tpu_custom_call.1} parent=39 // pred_region
        %s355 = sadd.s32 %s23, 1
        %s356 = smul.u32 %s355, 4
        %p357 = scmp.lt.s32.totalorder %s356, 15
        %s358 = scalar_select %p357, %s356, 15
        %p359 = scmp.lt.s32.totalorder %s22, 1
        %s360 = scalar_select %p359, %s22, 1
        %p361 = scmp.lt.s32.totalorder %s358, 15
        %s362 = scalar_select %p361, %s358, 15
        %s363 = smul.addr %s362, 2
        %s364 = smul.addr %s360, 32
        %s365 = sadd.s32 %s363, %s364
        %s366 = smul.addr %s365, 8
        %s367 = scalar_lea.vmem %s2, %s366
        %s368 = sadd.s32 %s23, 1
        %s369 = smul.u32 %s368, 4
        %p370 = scmp.lt.s32.totalorder %s369, 15
        %s371 = scalar_select %p370, %s369, 15
      $region52: #{tpu_custom_call.1} parent=39 // pred_fallthru
        _
    $region40: #{tpu_custom_call.1} parent=5 // pred_fallthru
      _
    %p372 = scmp.le.s32.totalorder 1, %s15
    %p373 = scmp.lt.s32.totalorder %s15, 9
    %p374 = pnand %p372, %p373
    %p375 = pneg %p374
    // Predicated region
    $region53: #{tpu_custom_call.1} parent=5 // pred_check
      _
    $region54: #{tpu_custom_call.1} parent=5 // pred_check_branch
      %377 = sbr.rel (%p374) target = $region56
    $region55: #{tpu_custom_call.1} parent=5 // pred_region
      %s378 = ssub.s32 %s15, 1
      %s379 = smul.u32 4, %s25
      %p380 = scmp.lt.s32.totalorder %s24, 1
      %s381 = scalar_select %p380, %s24, 1
      %p382 = scmp.lt.s32.totalorder %s379, 15
      %s383 = scalar_select %p382, %s379, 15
      %s384 = smul.addr %s383, 2
      %s385 = smul.addr %s381, 32
      %s386 = sadd.s32 %s384, %s385
      %s387 = smul.addr %s386, 8
      %s388 = scalar_lea.vmem %s0, %s387
      %p389 = pneg %p55
      %p390 = pneg %p52
      %s391 = smul.u32 %s25, 4
      %s392 = ssub.s32 %s391, 1
      %p393 = scmp.gt.s32.totalorder %s392, 0
      %s394 = scalar_select %p393, %s392, 0
      %p395 = scmp.lt.s32.totalorder %s24, 1
      %s396 = scalar_select %p395, %s24, 1
      %p397 = scmp.lt.s32.totalorder %s394, 15
      %s398 = scalar_select %p397, %s394, 15
      %s399 = smul.addr %s398, 2
      %s400 = smul.addr %s396, 32
      %s401 = sadd.s32 %s399, %s400
      %s402 = smul.addr %s401, 8
      %s403 = scalar_lea.vmem %s1, %s402
      %p404 = pneg %p91
      %p405 = pneg %p88
      %s406 = sadd.s32 %s25, 1
      %s407 = smul.u32 %s406, 4
      %p408 = scmp.lt.s32.totalorder %s407, 15
      %s409 = scalar_select %p408, %s407, 15
      %p410 = scmp.lt.s32.totalorder %s24, 1
      %s411 = scalar_select %p410, %s24, 1
      %p412 = scmp.lt.s32.totalorder %s409, 15
      %s413 = scalar_select %p412, %s409, 15
      %s414 = smul.addr %s413, 2
      %s415 = smul.addr %s411, 32
      %s416 = sadd.s32 %s414, %s415
      %s417 = smul.addr %s416, 8
      %s418 = scalar_lea.vmem %s2, %s417
      %p419 = pneg %p127
      %p420 = pneg %p124
      %p421 = pneg %p148
      %p422 = pneg %p145
      %p423 = pneg %p169
      %p424 = pneg %p166
      %p425 = pneg %p190
      %p426 = pneg %p187
      %p427 = pneg %p211
      %p428 = pneg %p208
      %p429 = pneg %p232
      %p430 = pneg %p229
      %p431 = pneg %p253
      %p432 = pneg %p250
      %p433 = pneg %p281
      %p434 = pneg %p278
      %s435 = smul.u32 4, %s25
      %p436 = scmp.lt.s32.totalorder %s24, 1
      %s437 = scalar_select %p436, %s24, 1
      %p438 = scmp.lt.s32.totalorder %s435, 15
      %s439 = scalar_select %p438, %s435, 15
      %s440 = smul.addr %s439, 2
      %s441 = smul.addr %s437, 32
      %s442 = sadd.s32 %s440, %s441
      %s443 = smul.addr %s442, 8
      %s444 = scalar_lea.vmem %s9, %s443
      %s445 = smul.u32 4, %s25
      %p446 = scmp.lt.s32.totalorder %s24, 1
      %s447 = scalar_select %p446, %s24, 1
      %p448 = scmp.lt.s32.totalorder %s445, 15
      %s449 = scalar_select %p448, %s445, 15
      %s450 = smul.addr %s449, 2
      %s451 = smul.addr %s447, 32
      %s452 = sadd.s32 %s450, %s451
      %s453 = smul.addr %s452, 8
      %s454 = scalar_lea.vmem %s0, %s453
      %s455 = smul.u32 4, %s25
      %s456 = smul.u32 %s25, 4
      %s457 = ssub.s32 %s456, 1
      %p458 = scmp.gt.s32.totalorder %s457, 0
      %s459 = scalar_select %p458, %s457, 0
      %p460 = scmp.lt.s32.totalorder %s24, 1
      %s461 = scalar_select %p460, %s24, 1
      %p462 = scmp.lt.s32.totalorder %s459, 15
      %s463 = scalar_select %p462, %s459, 15
      %s464 = smul.addr %s463, 2
      %s465 = smul.addr %s461, 32
      %s466 = sadd.s32 %s464, %s465
      %s467 = smul.addr %s466, 8
      %s468 = scalar_lea.vmem %s1, %s467
      %s469 = smul.u32 %s25, 4
      %s470 = ssub.s32 %s469, 1
      %p471 = scmp.gt.s32.totalorder %s470, 0
      %s472 = scalar_select %p471, %s470, 0
      %s473 = sadd.s32 %s25, 1
      %s474 = smul.u32 %s473, 4
      %p475 = scmp.lt.s32.totalorder %s474, 15
      %s476 = scalar_select %p475, %s474, 15
      %p477 = scmp.lt.s32.totalorder %s24, 1
      %s478 = scalar_select %p477, %s24, 1
      %p479 = scmp.lt.s32.totalorder %s476, 15
      %s480 = scalar_select %p479, %s476, 15
      %s481 = smul.addr %s480, 2
      %s482 = smul.addr %s478, 32
      %s483 = sadd.s32 %s481, %s482
      %s484 = smul.addr %s483, 8
      %s485 = scalar_lea.vmem %s2, %s484
      %s486 = sadd.s32 %s25, 1
      %s487 = smul.u32 %s486, 4
      %p488 = scmp.lt.s32.totalorder %s487, 15
      %s489 = scalar_select %p488, %s487, 15
      %s490 = smul.u32 4, %s25
      %p491 = scmp.lt.s32.totalorder %s24, 1
      %s492 = scalar_select %p491, %s24, 1
      %p493 = scmp.lt.s32.totalorder %s490, 15
      %s494 = scalar_select %p493, %s490, 15
      %s495 = smul.addr %s494, 2
      %s496 = smul.addr %s492, 32
      %s497 = sadd.s32 %s495, %s496
      %s498 = smul.addr %s497, 8
      %s499 = scalar_lea.vmem %s9, %s498
      %s500 = smul.u32 4, %s25
      %vm501 = vcmask 24576
      %502 = vst.msk [vmem:[#allocation2] sm:$0x1] %vm501, 0.0
      %503 = vst.msk [vmem:[#allocation2 + $0x18] sm:$0x1] %vm501, 0.0
      %504 = vst.msk [vmem:[#allocation2 + $0x30] sm:$0x1] %vm501, 0.0
      %505 = vst.msk [vmem:[#allocation2 + $0x48] sm:$0x1] %vm501, 0.0
      %506 = vst.msk [vmem:[#allocation2 + $0x60] sm:$0x1] %vm501, 0.0
      %507 = vst.msk [vmem:[#allocation2 + $0x78] sm:$0x1] %vm501, 0.0
      %508 = vst.msk [vmem:[#allocation2 + $0x11] sm:$0x1] %vm501, 0.0
      %509 = vst.msk [vmem:[#allocation2 + $0x29] sm:$0x1] %vm501, 0.0
      %510 = vst.msk [vmem:[#allocation2 + $0x41] sm:$0x1] %vm501, 0.0
      %511 = vst.msk [vmem:[#allocation2 + $0x59] sm:$0x1] %vm501, 0.0
      %512 = vst.msk [vmem:[#allocation2 + $0x71] sm:$0x1] %vm501, 0.0
      %513 = vst.msk [vmem:[#allocation2 + $0x89] sm:$0x1] %vm501, 0.0
      %v514 = vld [vmem:[%s454] sm:$0xff]
      %v515 = vld [vmem:[%s454 + $0x8] sm:$0xff]
      %v516 = vld [vmem:[%s454 + $0x10] sm:$0xff]
      %v517 = vld [vmem:[%s454 + $0x18] sm:$0xff]
      %v518 = vld [vmem:[%s454 + $0x20] sm:$0xff]
      %v519 = vld [vmem:[%s454 + $0x28] sm:$0xff]
      %v520 = vld [vmem:[%s454 + $0x30] sm:$0xff]
      %v521 = vld [vmem:[%s454 + $0x38] sm:$0xff]
      %s522 = scalar_lea.vmem [#allocation2], 24
      %vm523 = vcmask 31744
      %524 = vst.msk [vmem:[%s522 + $0x1] sm:$0xff] %vm523, %v514
      %525 = vst.msk [vmem:[%s522 + $0x9] sm:$0xff] %vm523, %v515
      %526 = vst.msk [vmem:[%s522 + $0x19] sm:$0xff] %vm523, %v516
      %527 = vst.msk [vmem:[%s522 + $0x21] sm:$0xff] %vm523, %v517
      %528 = vst.msk [vmem:[%s522 + $0x31] sm:$0xff] %vm523, %v518
      %529 = vst.msk [vmem:[%s522 + $0x39] sm:$0xff] %vm523, %v519
      %530 = vst.msk [vmem:[%s522 + $0x49] sm:$0xff] %vm523, %v520
      %531 = vst.msk [vmem:[%s522 + $0x51] sm:$0xff] %vm523, %v521
      %p532 = scmp.eq.s32.totalorder %s25, 0
      // Predicated region
      $region57: #{tpu_custom_call.1} parent=55 // pred_check
        %p533 = pneg %p532
      $region58: #{tpu_custom_call.1} parent=55 // pred_check_branch
        %535 = sbr.rel (%p533) target = $region60
      $region59: #{tpu_custom_call.1} parent=55 // pred_region
        %536 = vst.msk [vmem:[#allocation2 + $0x1] sm:$0xff] %vm523, 0.0
        %537 = vst.msk [vmem:[#allocation2 + $0x9] sm:$0xff] %vm523, 0.0
      $region60: #{tpu_custom_call.1} parent=55 // pred_fallthru
        _
      %p538 = scmp.ne.s32.totalorder %s25, 0
      // Predicated region
      $region61: #{tpu_custom_call.1} parent=55 // pred_check
        %p539 = pneg %p538
      $region62: #{tpu_custom_call.1} parent=55 // pred_check_branch
        %541 = sbr.rel (%p539) target = $region64
      $region63: #{tpu_custom_call.1} parent=55 // pred_region
        %v542 = vld [vmem:[%s468] sm:$0xff]
        %v543 = vld [vmem:[%s468 + $0x8] sm:$0xff]
        %544 = vst.msk [vmem:[#allocation2 + $0x1] sm:$0xff] %vm523, %v542
        %545 = vst.msk [vmem:[#allocation2 + $0x9] sm:$0xff] %vm523, %v543
      $region64: #{tpu_custom_call.1} parent=55 // pred_fallthru
        _
      %p546 = scmp.eq.s32.totalorder %s25, 3
      // Predicated region
      $region65: #{tpu_custom_call.1} parent=55 // pred_check
        %p547 = pneg %p546
      $region66: #{tpu_custom_call.1} parent=55 // pred_check_branch
        %549 = sbr.rel (%p547) target = $region68
      $region67: #{tpu_custom_call.1} parent=55 // pred_region
        %s550 = scalar_lea.vmem [#allocation2], 120
        %551 = vst.msk [vmem:[%s550 + $0x1] sm:$0xff] %vm523, 0.0
        %552 = vst.msk [vmem:[%s550 + $0x9] sm:$0xff] %vm523, 0.0
      $region68: #{tpu_custom_call.1} parent=55 // pred_fallthru
        _
      %p553 = scmp.ne.s32.totalorder %s25, 3
      // Predicated region
      $region69: #{tpu_custom_call.1} parent=55 // pred_check
        %p554 = pneg %p553
      $region70: #{tpu_custom_call.1} parent=55 // pred_check_branch
        %556 = sbr.rel (%p554) target = $region72
      $region71: #{tpu_custom_call.1} parent=55 // pred_region
        %v557 = vld [vmem:[%s485] sm:$0xff]
        %v558 = vld [vmem:[%s485 + $0x8] sm:$0xff]
        %s559 = scalar_lea.vmem [#allocation2], 120
        %560 = vst.msk [vmem:[%s559 + $0x1] sm:$0xff] %vm523, %v557
        %561 = vst.msk [vmem:[%s559 + $0x9] sm:$0xff] %vm523, %v558
      $region72: #{tpu_custom_call.1} parent=55 // pred_fallthru
        _
      %v562 = vld [vmem:[%s3] sm:$0xff]
      %v563 = vld [vmem:[%s3 + $0x8] sm:$0x1]
      %v564 = vld [vmem:[#allocation2] sm:$0xff]
      %v565 = vld [vmem:[#allocation2 + $0x8] sm:$0xff]
      %v566 = vld [vmem:[#allocation2 + $0x18] sm:$0xff]
      %v567 = vld [vmem:[#allocation2 + $0x20] sm:$0xff]
      %v568 = vld [vmem:[#allocation2 + $0x30] sm:$0xff]
      %v569 = vld [vmem:[#allocation2 + $0x38] sm:$0xff]
      %v570 = vld [vmem:[#allocation2 + $0x48] sm:$0xff]
      %v571 = vld [vmem:[#allocation2 + $0x50] sm:$0xff]
      %v572 = vperm.slane %v562, 0
      %v573 = vmul.f32 %v564, %v572
      %v574 = vmul.f32 %v565, %v572
      %v575 = vmul.f32 %v566, %v572
      %v576 = vmul.f32 %v567, %v572
      %v577 = vmul.f32 %v568, %v572
      %v578 = vmul.f32 %v569, %v572
      %v579 = vmul.f32 %v570, %v572
      %v580 = vmul.f32 %v571, %v572
      %v581 = vld [vmem:[#allocation2 + $0x1] sm:$0xff]
      %v582 = vld [vmem:[#allocation2 + $0x9] sm:$0xff]
      %v583 = vld [vmem:[#allocation2 + $0x19] sm:$0xff]
      %v584 = vld [vmem:[#allocation2 + $0x21] sm:$0xff]
      %v585 = vld [vmem:[#allocation2 + $0x31] sm:$0xff]
      %v586 = vld [vmem:[#allocation2 + $0x39] sm:$0xff]
      %v587 = vld [vmem:[#allocation2 + $0x49] sm:$0xff]
      %v588 = vld [vmem:[#allocation2 + $0x51] sm:$0xff]
      %v589 = vperm.slane %v562, 1
      %v590 = vmul.f32 %v581, %v589
      %v591 = vmul.f32 %v582, %v589
      %v592 = vmul.f32 %v583, %v589
      %v593 = vmul.f32 %v584, %v589
      %v594 = vmul.f32 %v585, %v589
      %v595 = vmul.f32 %v586, %v589
      %v596 = vmul.f32 %v587, %v589
      %v597 = vmul.f32 %v588, %v589
      %v598 = vadd.f32 %v573, %v590
      %v599 = vadd.f32 %v574, %v591
      %v600 = vadd.f32 %v575, %v592
      %v601 = vadd.f32 %v576, %v593
      %v602 = vadd.f32 %v577, %v594
      %v603 = vadd.f32 %v578, %v595
      %v604 = vadd.f32 %v579, %v596
      %v605 = vadd.f32 %v580, %v597
      %v606 = vld [vmem:[#allocation2 + $0x2] sm:$0xff]
      %v607 = vld [vmem:[#allocation2 + $0xa] sm:$0xff]
      %v608 = vld [vmem:[#allocation2 + $0x1a] sm:$0xff]
      %v609 = vld [vmem:[#allocation2 + $0x22] sm:$0xff]
      %v610 = vld [vmem:[#allocation2 + $0x32] sm:$0xff]
      %v611 = vld [vmem:[#allocation2 + $0x3a] sm:$0xff]
      %v612 = vld [vmem:[#allocation2 + $0x4a] sm:$0xff]
      %v613 = vld [vmem:[#allocation2 + $0x52] sm:$0xff]
      %v614 = vperm.slane %v562, 2
      %v615 = vmul.f32 %v606, %v614
      %v616 = vmul.f32 %v607, %v614
      %v617 = vmul.f32 %v608, %v614
      %v618 = vmul.f32 %v609, %v614
      %v619 = vmul.f32 %v610, %v614
      %v620 = vmul.f32 %v611, %v614
      %v621 = vmul.f32 %v612, %v614
      %v622 = vmul.f32 %v613, %v614
      %v623 = vadd.f32 %v598, %v615
      %v624 = vadd.f32 %v599, %v616
      %v625 = vadd.f32 %v600, %v617
      %v626 = vadd.f32 %v601, %v618
      %v627 = vadd.f32 %v602, %v619
      %v628 = vadd.f32 %v603, %v620
      %v629 = vadd.f32 %v604, %v621
      %v630 = vadd.f32 %v605, %v622
      %v631 = vld [vmem:[%s522] sm:$0xff]
      %v632 = vld [vmem:[%s522 + $0x8] sm:$0xff]
      %v633 = vld [vmem:[%s522 + $0x18] sm:$0xff]
      %v634 = vld [vmem:[%s522 + $0x20] sm:$0xff]
      %v635 = vld [vmem:[%s522 + $0x30] sm:$0xff]
      %v636 = vld [vmem:[%s522 + $0x38] sm:$0xff]
      %v637 = vld [vmem:[%s522 + $0x48] sm:$0xff]
      %v638 = vld [vmem:[%s522 + $0x50] sm:$0xff]
      %v639 = vperm.slane %v562, 3
      %v640 = vmul.f32 %v631, %v639
      %v641 = vmul.f32 %v632, %v639
      %v642 = vmul.f32 %v633, %v639
      %v643 = vmul.f32 %v634, %v639
      %v644 = vmul.f32 %v635, %v639
      %v645 = vmul.f32 %v636, %v639
      %v646 = vmul.f32 %v637, %v639
      %v647 = vmul.f32 %v638, %v639
      %v648 = vadd.f32 %v623, %v640
      %v649 = vadd.f32 %v624, %v641
      %v650 = vadd.f32 %v625, %v642
      %v651 = vadd.f32 %v626, %v643
      %v652 = vadd.f32 %v627, %v644
      %v653 = vadd.f32 %v628, %v645
      %v654 = vadd.f32 %v629, %v646
      %v655 = vadd.f32 %v630, %v647
      %v656 = vld [vmem:[%s522 + $0x1] sm:$0xff]
      %v657 = vld [vmem:[%s522 + $0x9] sm:$0xff]
      %v658 = vld [vmem:[%s522 + $0x19] sm:$0xff]
      %v659 = vld [vmem:[%s522 + $0x21] sm:$0xff]
      %v660 = vld [vmem:[%s522 + $0x31] sm:$0xff]
      %v661 = vld [vmem:[%s522 + $0x39] sm:$0xff]
      %v662 = vld [vmem:[%s522 + $0x49] sm:$0xff]
      %v663 = vld [vmem:[%s522 + $0x51] sm:$0xff]
      %v664 = vperm.slane %v562, 4
      %v665 = vmul.f32 %v656, %v664
      %v666 = vmul.f32 %v657, %v664
      %v667 = vmul.f32 %v658, %v664
      %v668 = vmul.f32 %v659, %v664
      %v669 = vmul.f32 %v660, %v664
      %v670 = vmul.f32 %v661, %v664
      %v671 = vmul.f32 %v662, %v664
      %v672 = vmul.f32 %v663, %v664
      %v673 = vadd.f32 %v648, %v665
      %v674 = vadd.f32 %v649, %v666
      %v675 = vadd.f32 %v650, %v667
      %v676 = vadd.f32 %v651, %v668
      %v677 = vadd.f32 %v652, %v669
      %v678 = vadd.f32 %v653, %v670
      %v679 = vadd.f32 %v654, %v671
      %v680 = vadd.f32 %v655, %v672
      %v681 = vld [vmem:[%s522 + $0x2] sm:$0xff]
      %v682 = vld [vmem:[%s522 + $0xa] sm:$0xff]
      %v683 = vld [vmem:[%s522 + $0x1a] sm:$0xff]
      %v684 = vld [vmem:[%s522 + $0x22] sm:$0xff]
      %v685 = vld [vmem:[%s522 + $0x32] sm:$0xff]
      %v686 = vld [vmem:[%s522 + $0x3a] sm:$0xff]
      %v687 = vld [vmem:[%s522 + $0x4a] sm:$0xff]
      %v688 = vld [vmem:[%s522 + $0x52] sm:$0xff]
      %v689 = vperm.slane %v562, 5
      %v690 = vmul.f32 %v681, %v689
      %v691 = vmul.f32 %v682, %v689
      %v692 = vmul.f32 %v683, %v689
      %v693 = vmul.f32 %v684, %v689
      %v694 = vmul.f32 %v685, %v689
      %v695 = vmul.f32 %v686, %v689
      %v696 = vmul.f32 %v687, %v689
      %v697 = vmul.f32 %v688, %v689
      %v698 = vadd.f32 %v673, %v690
      %v699 = vadd.f32 %v674, %v691
      %v700 = vadd.f32 %v675, %v692
      %v701 = vadd.f32 %v676, %v693
      %v702 = vadd.f32 %v677, %v694
      %v703 = vadd.f32 %v678, %v695
      %v704 = vadd.f32 %v679, %v696
      %v705 = vadd.f32 %v680, %v697
      %s706 = scalar_lea.vmem [#allocation2], 48
      %v707 = vld [vmem:[%s706] sm:$0xff]
      %v708 = vld [vmem:[%s706 + $0x8] sm:$0xff]
      %v709 = vld [vmem:[%s706 + $0x18] sm:$0xff]
      %v710 = vld [vmem:[%s706 + $0x20] sm:$0xff]
      %v711 = vld [vmem:[%s706 + $0x30] sm:$0xff]
      %v712 = vld [vmem:[%s706 + $0x38] sm:$0xff]
      %v713 = vld [vmem:[%s706 + $0x48] sm:$0xff]
      %v714 = vld [vmem:[%s706 + $0x50] sm:$0xff]
      %v715 = vperm.slane %v562, 6
      %v716 = vmul.f32 %v707, %v715
      %v717 = vmul.f32 %v708, %v715
      %v718 = vmul.f32 %v709, %v715
      %v719 = vmul.f32 %v710, %v715
      %v720 = vmul.f32 %v711, %v715
      %v721 = vmul.f32 %v712, %v715
      %v722 = vmul.f32 %v713, %v715
      %v723 = vmul.f32 %v714, %v715
      %v724 = vadd.f32 %v698, %v716
      %v725 = vadd.f32 %v699, %v717
      %v726 = vadd.f32 %v700, %v718
      %v727 = vadd.f32 %v701, %v719
      %v728 = vadd.f32 %v702, %v720
      %v729 = vadd.f32 %v703, %v721
      %v730 = vadd.f32 %v704, %v722
      %v731 = vadd.f32 %v705, %v723
      %v732 = vld [vmem:[%s706 + $0x1] sm:$0xff]
      %v733 = vld [vmem:[%s706 + $0x9] sm:$0xff]
      %v734 = vld [vmem:[%s706 + $0x19] sm:$0xff]
      %v735 = vld [vmem:[%s706 + $0x21] sm:$0xff]
      %v736 = vld [vmem:[%s706 + $0x31] sm:$0xff]
      %v737 = vld [vmem:[%s706 + $0x39] sm:$0xff]
      %v738 = vld [vmem:[%s706 + $0x49] sm:$0xff]
      %v739 = vld [vmem:[%s706 + $0x51] sm:$0xff]
      %v740 = vperm.slane %v562, 7
      %v741 = vmul.f32 %v732, %v740
      %v742 = vmul.f32 %v733, %v740
      %v743 = vmul.f32 %v734, %v740
      %v744 = vmul.f32 %v735, %v740
      %v745 = vmul.f32 %v736, %v740
      %v746 = vmul.f32 %v737, %v740
      %v747 = vmul.f32 %v738, %v740
      %v748 = vmul.f32 %v739, %v740
      %v749 = vadd.f32 %v724, %v741
      %v750 = vadd.f32 %v725, %v742
      %v751 = vadd.f32 %v726, %v743
      %v752 = vadd.f32 %v727, %v744
      %v753 = vadd.f32 %v728, %v745
      %v754 = vadd.f32 %v729, %v746
      %v755 = vadd.f32 %v730, %v747
      %v756 = vadd.f32 %v731, %v748
      %v757 = vld [vmem:[%s706 + $0x2] sm:$0xff]
      %v758 = vld [vmem:[%s706 + $0xa] sm:$0xff]
      %v759 = vld [vmem:[%s706 + $0x1a] sm:$0xff]
      %v760 = vld [vmem:[%s706 + $0x22] sm:$0xff]
      %v761 = vld [vmem:[%s706 + $0x32] sm:$0xff]
      %v762 = vld [vmem:[%s706 + $0x3a] sm:$0xff]
      %v763 = vld [vmem:[%s706 + $0x4a] sm:$0xff]
      %v764 = vld [vmem:[%s706 + $0x52] sm:$0xff]
      %v765 = vperm.slane %v563, 0
      %v766 = vmul.f32 %v757, %v765
      %v767 = vmul.f32 %v758, %v765
      %v768 = vmul.f32 %v759, %v765
      %v769 = vmul.f32 %v760, %v765
      %v770 = vmul.f32 %v761, %v765
      %v771 = vmul.f32 %v762, %v765
      %v772 = vmul.f32 %v763, %v765
      %v773 = vmul.f32 %v764, %v765
      %v774 = vadd.f32 %v749, %v766
      %v775 = vadd.f32 %v750, %v767
      %v776 = vadd.f32 %v751, %v768
      %v777 = vadd.f32 %v752, %v769
      %v778 = vadd.f32 %v753, %v770
      %v779 = vadd.f32 %v754, %v771
      %v780 = vadd.f32 %v755, %v772
      %v781 = vadd.f32 %v756, %v773
      %v782 = vld [vmem:[%s4] sm:$0x1]
      %v784 = vperm.slane %v782, 0
      %v786 = vmul.f32 %v774, %v784
      %v787 = vmul.f32 %v775, %v784
      %v788 = vmul.f32 %v776, %v784
      %v789 = vmul.f32 %v777, %v784
      %v790 = vmul.f32 %v778, %v784
      %v791 = vmul.f32 %v779, %v784
      %v792 = vmul.f32 %v780, %v784
      %v793 = vmul.f32 %v781, %v784
      %v794 = vld [vmem:[%s5] sm:$0x1]
      %v796 = vperm.slane %v794, 0
      %v798 = vadd.f32 %v786, %v796
      %v799 = vadd.f32 %v787, %v796
      %v800 = vadd.f32 %v788, %v796
      %v801 = vadd.f32 %v789, %v796
      %v802 = vadd.f32 %v790, %v796
      %v803 = vadd.f32 %v791, %v796
      %v804 = vadd.f32 %v792, %v796
      %v805 = vadd.f32 %v793, %v796
      %v806 = vmax.f32 %v798, 0.0
      %v807 = vmax.f32 %v799, 0.0
      %v808 = vmax.f32 %v800, 0.0
      %v809 = vmax.f32 %v801, 0.0
      %v810 = vmax.f32 %v802, 0.0
      %v811 = vmax.f32 %v803, 0.0
      %v812 = vmax.f32 %v804, 0.0
      %v813 = vmax.f32 %v805, 0.0
      %v814 = vmin.f32 %v806, 6.0
      %v815 = vmin.f32 %v807, 6.0
      %v816 = vmin.f32 %v808, 6.0
      %v817 = vmin.f32 %v809, 6.0
      %v818 = vmin.f32 %v810, 6.0
      %v819 = vmin.f32 %v811, 6.0
      %v820 = vmin.f32 %v812, 6.0
      %v821 = vmin.f32 %v813, 6.0
      %v822 = vld [vmem:[%s6] sm:$0xf]
      %v824 = vsel %vm523, %v814, 0
      %v827 = vsel %vm523, %v815, 0
      %v830 = vsel %vm523, %v816, 0
      %v833 = vsel %vm523, %v817, 0
      %v836 = vsel %vm523, %v818, 0
      %v839 = vsel %vm523, %v819, 0
      %v842 = vsel %vm523, %v820, 0
      %v845 = vsel %vm523, %v821, 0
      %vm847 = vcmask 1043456
      %v849 = vsel %vm847, %v822, 0
      %851 = vmatpush.msra.mxu0 0.0
      %852 = vmatpush.msra.mxu0 0.0
      %853 = vmatpush.msra.mxu0 0.0
      %854 = vmatpush.msra.mxu0 0.0
      %855 = vmatpush.msra.mxu0 0.0
      %856 = vmatpush.msra.mxu0 0.0
      %857 = vmatpush.msra.mxu0 0.0
      %858 = vmatpush.msra.mxu0 0.0
      %859 = vmatpush.msra.mxu0 0.0
      %860 = vmatpush.msra.mxu0 0.0
      %861 = vmatpush.msra.mxu0 0.0
      %862 = vmatpush.msra.mxu0 0.0
      %863 = vmatpush.msra.mxu0 0.0
      %864 = vmatpush.msra.mxu0 0.0
      %865 = vmatpush.msra.mxu0 0.0
      %866 = vmatpush.msra.mxu0 %v849
      %867 = vmatmul.f32.gmra.mxu0 %v824
      %v868 = vpop.f32.mrf.mxu0
      %v869 = vadd.f32 0.0, %v868
      %870 = vmatmul.f32.gmra.mxu0 %v827
      %v871 = vpop.f32.mrf.mxu0
      %v872 = vadd.f32 0.0, %v871
      %873 = vmatmul.f32.gmra.mxu0 %v830
      %v874 = vpop.f32.mrf.mxu0
      %v875 = vadd.f32 0.0, %v874
      %876 = vmatmul.f32.gmra.mxu0 %v833
      %v877 = vpop.f32.mrf.mxu0
      %v878 = vadd.f32 0.0, %v877
      %879 = vmatmul.f32.gmra.mxu0 %v836
      %v880 = vpop.f32.mrf.mxu0
      %v881 = vadd.f32 0.0, %v880
      %882 = vmatmul.f32.gmra.mxu0 %v839
      %v883 = vpop.f32.mrf.mxu0
      %v884 = vadd.f32 0.0, %v883
      %885 = vmatmul.f32.gmra.mxu0 %v842
      %v886 = vpop.f32.mrf.mxu0
      %v887 = vadd.f32 0.0, %v886
      %888 = vmatmul.f32.gmra.mxu0 %v845
      %v889 = vpop.f32.mrf.mxu0
      %v890 = vadd.f32 0.0, %v889
      %891 = vdwg.mxu0
      %v892 = vld [vmem:[%s7] sm:$0x1]
      %v894 = vperm.slane %v892, 0
      %v896 = vmul.f32 %v869, %v894
      %v897 = vmul.f32 %v872, %v894
      %v898 = vmul.f32 %v875, %v894
      %v899 = vmul.f32 %v878, %v894
      %v900 = vmul.f32 %v881, %v894
      %v901 = vmul.f32 %v884, %v894
      %v902 = vmul.f32 %v887, %v894
      %v903 = vmul.f32 %v890, %v894
      %v904 = vld [vmem:[%s8] sm:$0x1]
      %v906 = vperm.slane %v904, 0
      %v908 = vadd.f32 %v896, %v906
      %v909 = vadd.f32 %v897, %v906
      %v910 = vadd.f32 %v898, %v906
      %v911 = vadd.f32 %v899, %v906
      %v912 = vadd.f32 %v900, %v906
      %v913 = vadd.f32 %v901, %v906
      %v914 = vadd.f32 %v902, %v906
      %v915 = vadd.f32 %v903, %v906
      %v916 = vmax.f32 %v908, 0.0
      %v917 = vmax.f32 %v909, 0.0
      %v918 = vmax.f32 %v910, 0.0
      %v919 = vmax.f32 %v911, 0.0
      %v920 = vmax.f32 %v912, 0.0
      %v921 = vmax.f32 %v913, 0.0
      %v922 = vmax.f32 %v914, 0.0
      %v923 = vmax.f32 %v915, 0.0
      %v924 = vmin.f32 %v916, 6.0
      %v925 = vmin.f32 %v917, 6.0
      %v926 = vmin.f32 %v918, 6.0
      %v927 = vmin.f32 %v919, 6.0
      %v928 = vmin.f32 %v920, 6.0
      %v929 = vmin.f32 %v921, 6.0
      %v930 = vmin.f32 %v922, 6.0
      %v931 = vmin.f32 %v923, 6.0
      %vm932 = vcmask 64512
      %933 = vst.msk [vmem:[%s499] sm:$0xff] %vm932, %v924
      %934 = vst.msk [vmem:[%s499 + $0x8] sm:$0xff] %vm932, %v925
      %935 = vst.msk [vmem:[%s499 + $0x10] sm:$0xff] %vm932, %v926
      %936 = vst.msk [vmem:[%s499 + $0x18] sm:$0xff] %vm932, %v927
      %937 = vst.msk [vmem:[%s499 + $0x20] sm:$0xff] %vm932, %v928
      %938 = vst.msk [vmem:[%s499 + $0x28] sm:$0xff] %vm932, %v929
      %939 = vst.msk [vmem:[%s499 + $0x30] sm:$0xff] %vm932, %v930
      %940 = vst.msk [vmem:[%s499 + $0x38] sm:$0xff] %vm932, %v931
      %s941 = smul.u32 4, %s25
      %p942 = scmp.lt.s32.totalorder %s24, 1
      %s943 = scalar_select %p942, %s24, 1
      %p944 = scmp.lt.s32.totalorder %s941, 15
      %s945 = scalar_select %p944, %s941, 15
      %s946 = smul.addr %s945, 2
      %s947 = smul.addr %s943, 32
      %s948 = sadd.s32 %s946, %s947
      %s949 = smul.addr %s948, 8
      %s950 = scalar_lea.vmem %s9, %s949
      // Predicated region
      $region73: #{tpu_custom_call.1} parent=55 // pred_check
        %p951 = pneg %p278
      $region74: #{tpu_custom_call.1} parent=55 // pred_check_branch
        %953 = sbr.rel (%p951) target = $region76
      $region75: #{tpu_custom_call.1} parent=55 // pred_region
        %s954 = smul.u32 4, %s25
      $region76: #{tpu_custom_call.1} parent=55 // pred_fallthru
        _
    $region56: #{tpu_custom_call.1} parent=5 // pred_fallthru
      _
    %p955 = scmp.le.s32.totalorder 2, %s15
    // Predicated region
    $region77: #{tpu_custom_call.1} parent=5 // pred_check
      %p956 = pneg %p955
    $region78: #{tpu_custom_call.1} parent=5 // pred_check_branch
      %958 = sbr.rel (%p956) target = $region80
    $region79: #{tpu_custom_call.1} parent=5 // pred_region
      %s959 = ssub.s32 %s15, 2
      // Predicated region
      $region81: #{tpu_custom_call.1} parent=79 // pred_check
        %p960 = pneg %p284
      $region82: #{tpu_custom_call.1} parent=79 // pred_check_branch
        %962 = sbr.rel (%p960) target = $region84
      $region83: #{tpu_custom_call.1} parent=79 // pred_region
        %s963 = smul.u32 4, %s27
        %p964 = scmp.lt.s32.totalorder %s26, 1
        %s965 = scalar_select %p964, %s26, 1
        %p966 = scmp.lt.s32.totalorder %s963, 15
        %s967 = scalar_select %p966, %s963, 15
        %s968 = smul.addr %s967, 2
        %s969 = smul.addr %s965, 32
        %s970 = sadd.s32 %s968, %s969
        %s971 = smul.addr %s970, 8
        %s972 = scalar_lea.vmem %s9, %s971
      $region84: #{tpu_custom_call.1} parent=79 // pred_fallthru
        _
    $region80: #{tpu_custom_call.1} parent=5 // pred_fallthru
      _
  $region6: #{tpu_custom_call.1} parent=0 // loop_footer
    %s19 = sadd.s32 1, %s15
  $region7: #{tpu_custom_call.1} parent=0 // loop_footer_branch
    %14 = sbr.rel target = $region3
  $region8: #{tpu_custom_call.1} parent=0 // loop_exit
    _

</llo_original>
